<compile_context>
chip_gen: v7x
topology: tpu7x:2x2x1
jax: 0.10.0
libtpu: 0.0.40
codegen_flags: <defaults>
</compile_context>

<pallas_src>
import jax
import jax.numpy as jnp
from jax.experimental import pallas as pl
from jax.experimental.pallas import tpu as pltpu

NUM_CLASSES = 10


def _custom_nn_kernel(x_ref, w_ref, b_ref, o_ref):
    # x_ref: (TN, K_pad)  w_ref: (K_pad, 10)  b_ref: (1, 10)  o_ref: (TN, 10)
    # Conv2d(1, 10, 28) on a 28x28 input == fully-connected layer (MXU matmul).
    y = jnp.dot(x_ref[...], w_ref[...], preferred_element_type=jnp.float32)
    y = y + b_ref[...].astype(jnp.float32)      # broadcast bias over batch
    y = jnp.maximum(y, 0.0)                     # ReLU
    # log_softmax over the class dim (last axis), numerically stable, in f32.
    m = jnp.max(y, axis=-1, keepdims=True)
    z = y - m
    lse = jnp.log(jnp.sum(jnp.exp(z), axis=-1, keepdims=True))
    o_ref[...] = (z - lse).astype(o_ref.dtype)


def custom_nn_forward(x_nchw, conv_weight, conv_bias, *, block_n=1024,
                      use_bf16=False):
    """x_nchw: (N, 1, 28, 28); conv_weight: (10, 1, 28, 28); conv_bias: (10,).

    Returns (N, 10) f32 log-probabilities, matching the PyTorch module.
    """
    N = x_nchw.shape[0]
    K = conv_weight.shape[1] * conv_weight.shape[2] * conv_weight.shape[3]  # 784

    in_dtype = jnp.bfloat16 if use_bf16 else jnp.float32

    # Glue: flatten the full-extent conv into a matmul.
    x_flat = x_nchw.reshape(N, K).astype(in_dtype)          # (N, 784)
    w_flat = conv_weight.reshape(NUM_CLASSES, K).T.astype(in_dtype)  # (784, 10)
    b_row = conv_bias.reshape(1, NUM_CLASSES).astype(jnp.float32)    # (1, 10)

    # Pad the contraction dim to a multiple of 128 lanes (784 -> 896).
    # Zero padding does not change the dot result.
    k_pad = ((K + 127) // 128) * 128
    if k_pad != K:
        x_flat = jnp.pad(x_flat, ((0, 0), (0, k_pad - K)))
        w_flat = jnp.pad(w_flat, ((0, k_pad - K), (0, 0)))

    # Row tile: multiple of 8, no larger than needed for this batch.
    tn = min(block_n, ((N + 7) // 8) * 8)
    tn = ((tn + 7) // 8) * 8
    n_pad = pl.cdiv(N, tn) * tn
    if n_pad != N:
        # Padded rows are dropped below; they never reach the caller.
        x_flat = jnp.pad(x_flat, ((0, n_pad - N), (0, 0)))

    grid = (n_pad // tn,)

    bytes_per_elem = 2 if use_bf16 else 4
    cost = pl.CostEstimate(
        flops=2 * N * K * NUM_CLASSES,
        transcendentals=N * (NUM_CLASSES + 1),          # exp per class + log
        bytes_accessed=(N * k_pad * bytes_per_elem      # activations (dominant)
                        + k_pad * NUM_CLASSES * bytes_per_elem  # weights
                        + N * NUM_CLASSES * 4),         # output
    )

    out = pl.pallas_call(
        _custom_nn_kernel,
        out_shape=jax.ShapeDtypeStruct((n_pad, NUM_CLASSES), jnp.float32),
        grid=grid,
        in_specs=[
            # Batch-tiled activations: double-buffered across grid steps.
            pl.BlockSpec((tn, k_pad), lambda i: (i, 0)),
            # Weights / bias: constant index map -> stay VMEM-resident.
            pl.BlockSpec((k_pad, NUM_CLASSES), lambda i: (0, 0)),
            pl.BlockSpec((1, NUM_CLASSES), lambda i: (0, 0)),
        ],
        out_specs=pl.BlockSpec((tn, NUM_CLASSES), lambda i: (i, 0)),
        compiler_params=pltpu.CompilerParams(
            # No reduction axis in this grid; "parallel" lets v7x shard the
            # batch-tile axis across its two TensorCores.
            dimension_semantics=("parallel",),
        ),
        cost_estimate=cost,
    )(x_flat, w_flat, b_row)

    return out[:N]  # drop padded batch rows -> (N, 10) log-probabilities


if __name__ == "__main__":
    key = jax.random.PRNGKey(0)
    k_x, k_w, k_b = jax.random.split(key, 3)

    # Small MNIST-like batch: Conv2d(1, 10, 28) requires 28x28 spatial input.
    N = 2
    x = jax.random.normal(k_x, (N, 1, 28, 28), dtype=jnp.float32)

    # Deterministic synthetic parameters (shapes from nn.Conv2d(1, 10, 28)).
    fan_in = 1 * 28 * 28
    bound = 1.0 / (fan_in ** 0.5)
    conv_weight = jax.random.uniform(
        k_w, (10, 1, 28, 28), minval=-bound, maxval=bound, dtype=jnp.float32)
    conv_bias = jax.random.uniform(
        k_b, (10,), minval=-bound, maxval=bound, dtype=jnp.float32)

    # f32 path (default): tight check against a pure-JAX reference.
    out = custom_nn_forward(x, conv_weight, conv_bias)
    out = jax.block_until_ready(out)

    x_flat = x.reshape(N, -1)
    w_flat = conv_weight.reshape(10, -1).T
    y_ref = jnp.maximum(x_flat @ w_flat + conv_bias[None, :], 0.0)
    ref = jax.nn.log_softmax(y_ref, axis=-1)
    assert out.shape == (N, 10)
    assert jnp.allclose(out, ref, atol=1e-5, rtol=1e-5), "f32 mismatch vs JAX reference"

    # bf16 activation path (halves HBM read traffic); compare against a
    # reference computed on identically-quantized inputs.
    out_bf16 = custom_nn_forward(x, conv_weight, conv_bias, use_bf16=True)
    out_bf16 = jax.block_until_ready(out_bf16)
    xq = x_flat.astype(jnp.bfloat16).astype(jnp.float32)
    wq = w_flat.astype(jnp.bfloat16).astype(jnp.float32)
    y_ref_q = jnp.maximum(xq @ wq + conv_bias[None, :], 0.0)
    ref_q = jax.nn.log_softmax(y_ref_q, axis=-1)
    assert jnp.allclose(out_bf16, ref_q, atol=2e-2, rtol=2e-2), "bf16 mismatch vs JAX reference"

    print("KERNEL_OK")
</pallas_src>

<mosaic_0001>
module attributes {stable_mosaic.version = 11 : i64} {
  func.func @_custom_nn_kernel(%arg0: i32, %arg1: memref<8x896xf32, #tpu.memory_space<vmem>>, %arg2: memref<896x10xf32, #tpu.memory_space<vmem>>, %arg3: memref<1x10xf32, #tpu.memory_space<vmem>>, %arg4: memref<8x10xf32, #tpu.memory_space<vmem>>) attributes {dimension_semantics = [#tpu.dimension_semantics<parallel>], iteration_bounds = array<i64: 1>, scalar_prefetch = 0 : i64, scratch_operands = 0 : i64, tpu.core_type = #tpu.core_type<tc>, window_params = [{transform_indices = @transform_0, window_bounds = array<i64: 8, 896>}, {pipeline_mode = #tpu.pipeline_mode<synchronous>, transform_indices = @transform_1, window_bounds = array<i64: 896, 10>}, {pipeline_mode = #tpu.pipeline_mode<synchronous>, transform_indices = @transform_2, window_bounds = array<i64: 1, 10>}, {transform_indices = @transform_3, window_bounds = array<i64: 8, 10>}]} {
    %c0 = arith.constant 0 : index
    %c0_0 = arith.constant 0 : index
    %0 = vector.load %arg1[%c0, %c0_0] : memref<8x896xf32, #tpu.memory_space<vmem>>, vector<8x896xf32>
    %c0_1 = arith.constant 0 : index
    %c0_2 = arith.constant 0 : index
    %1 = vector.load %arg2[%c0_1, %c0_2] : memref<896x10xf32, #tpu.memory_space<vmem>>, vector<896x10xf32>
    %cst = arith.constant dense<0.000000e+00> : vector<8x10xf32>
    %2 = tpu.matmul %0, %1, %cst {dimension_numbers = #tpu.dot_dimension_numbers<[1], [0], [0], [1], [0, 0, 1, 1], [], []>} : vector<8x896xf32>, vector<896x10xf32>, vector<8x10xf32> -> vector<8x10xf32>
    %c0_3 = arith.constant 0 : index
    %c0_4 = arith.constant 0 : index
    %3 = vector.load %arg3[%c0_3, %c0_4] : memref<1x10xf32, #tpu.memory_space<vmem>>, vector<1x10xf32>
    %4 = vector.broadcast %3 : vector<1x10xf32> to vector<8x10xf32>
    %5 = arith.addf %2, %4 : vector<8x10xf32>
    %cst_5 = arith.constant 0.000000e+00 : f32
    %6 = vector.broadcast %cst_5 : f32 to vector<8x10xf32>
    %7 = arith.maximumf %5, %6 : vector<8x10xf32>
    %cst_6 = arith.constant dense<0xFF800000> : vector<8xf32>
    %8 = vector.multi_reduction <maximumf>, %7, %cst_6 [1] : vector<8x10xf32> to vector<8xf32>
    %9 = vector.shape_cast %8 : vector<8xf32> to vector<8x1xf32>
    %10 = vector.broadcast %9 : vector<8x1xf32> to vector<8x10xf32>
    %11 = arith.subf %7, %10 : vector<8x10xf32>
    %12 = math.exp %11 : vector<8x10xf32>
    %cst_7 = arith.constant dense<0.000000e+00> : vector<8xf32>
    %13 = vector.multi_reduction <add>, %12, %cst_7 [1] : vector<8x10xf32> to vector<8xf32>
    %14 = vector.shape_cast %13 : vector<8xf32> to vector<8x1xf32>
    %15 = math.log %14 : vector<8x1xf32>
    %16 = vector.broadcast %15 : vector<8x1xf32> to vector<8x10xf32>
    %17 = arith.subf %11, %16 : vector<8x10xf32>
    %c0_8 = arith.constant 0 : index
    %c0_9 = arith.constant 0 : index
    %18 = vector.load %arg4[%c0_8, %c0_9] : memref<8x10xf32, #tpu.memory_space<vmem>>, vector<8x10xf32>
    tpu.vector_store %arg4[%c0_8, %c0_9], %17 {strides = array<i32>} : memref<8x10xf32, #tpu.memory_space<vmem>>, vector<8x10xf32>,
    return
  }
  func.func @transform_0(%arg0: i32) -> (i32, i32) {
    %c0_i32 = arith.constant 0 : i32
    %c0_i32_0 = arith.constant 0 : i32
    return %arg0, %c0_i32 : i32, i32
  }
  func.func @transform_1(%arg0: i32) -> (i32, i32) {
    %c0_i32 = arith.constant 0 : i32
    %c0_i32_0 = arith.constant 0 : i32
    %c0_i32_1 = arith.constant 0 : i32
    return %c0_i32, %c0_i32_0 : i32, i32
  }
  func.func @transform_2(%arg0: i32) -> (i32, i32) {
    %c0_i32 = arith.constant 0 : i32
    %c0_i32_0 = arith.constant 0 : i32
    %c0_i32_1 = arith.constant 0 : i32
    return %c0_i32, %c0_i32_0 : i32, i32
  }
  func.func @transform_3(%arg0: i32) -> (i32, i32) {
    %c0_i32 = arith.constant 0 : i32
    %c0_i32_0 = arith.constant 0 : i32
    return %arg0, %c0_i32 : i32, i32
  }
}

</mosaic_0001>

<llo_original>
// kernel: tpu_custom_call.1
$region0: #{tpu_custom_call.1}
  #allocation0 [shape = 'u32[]', space=smem, size = 0x4, offset = 0x4, fixed_abs, tag = 'smem constant byte address 0x4 - core index']
  #allocation1 [shape = 'u32[144,128]{1,0:T(1,128)}', space=vmem, size = 0x12000, scoped, tag = 'internal scratch']
  %s0 = inlined_call_operand.vmem [shape: f32[8,896], index: 0, kind: input, shape index: {}]
  %s1 = inlined_call_operand.vmem [shape: f32[896,10], index: 1, kind: input, shape index: {}]
  %s2 = inlined_call_operand.vmem [shape: f32[1,10], index: 2, kind: input, shape index: {}]
  %s3 = inlined_call_operand.hbm [shape: f32[8,10], index: 3, kind: output, shape index: {}]
  %s4 = sld [smem:[#allocation0]]
  $region22: #{tpu_custom_call.1} parent=0
    _
  %s6 = ssub.s32 1, %s4
  %s7 = scalar_select 0, %s6, %s4
  $region1: #{tpu_custom_call.1} parent=0
    #allocation2 [shape = 'u8[4096]{0}', space=vmem, size = 0x1000, scoped, tag = 'output window, operand 0, single buffered']
    #allocation3 [shape = 's32[1]{0}', space=sflag, size = 0x4, scoped, tag = 'scoped memory for tpu_custom_call.1']
    %8 = vsyncpa [#allocation3], 0
    // Predicated region
    $region2: #{tpu_custom_call.1} parent=1 // pred_check
      _
    $region3: #{tpu_custom_call.1} parent=1 // pred_check_branch
      %10 = sbr.rel (0) target = $region5
    $region4: #{tpu_custom_call.1} parent=1 // pred_region
      _
    $region5: #{tpu_custom_call.1} parent=1 // pred_fallthru
      _
    // Predicated region
    $region6: #{tpu_custom_call.1} parent=1 // pred_check
      _
    $region7: #{tpu_custom_call.1} parent=1 // pred_check_branch
      %12 = sbr.rel (0) target = $region9
    $region8: #{tpu_custom_call.1} parent=1 // pred_region
      _
    $region9: #{tpu_custom_call.1} parent=1 // pred_fallthru
      _
    // Predicated region
    $region10: #{tpu_custom_call.1} parent=1 // pred_check
      _
    $region11: #{tpu_custom_call.1} parent=1 // pred_check_branch
      %14 = sbr.rel (0) target = $region13
    $region12: #{tpu_custom_call.1} parent=1 // pred_region
      _
    $region13: #{tpu_custom_call.1} parent=1 // pred_fallthru
      _
    %v15 = vld [vmem:[%s0] sm:$0xff]
    %v16 = vld [vmem:[%s0 + $0x8] sm:$0xff]
    %v17 = vld [vmem:[%s0 + $0x10] sm:$0xff]
    %v18 = vld [vmem:[%s0 + $0x18] sm:$0xff]
    %v19 = vld [vmem:[%s0 + $0x20] sm:$0xff]
    %v20 = vld [vmem:[%s0 + $0x28] sm:$0xff]
    %v21 = vld [vmem:[%s0 + $0x30] sm:$0xff]
    %v22 = vld [vmem:[%s1] sm:$0xff]
    %v23 = vld [vmem:[%s1 + $0x8] sm:$0xff]
    %v24 = vld [vmem:[%s1 + $0x10] sm:$0xff]
    %v25 = vld [vmem:[%s1 + $0x18] sm:$0xff]
    %v26 = vld [vmem:[%s1 + $0x20] sm:$0xff]
    %v27 = vld [vmem:[%s1 + $0x28] sm:$0xff]
    %v28 = vld [vmem:[%s1 + $0x30] sm:$0xff]
    %v29 = vld [vmem:[%s1 + $0x38] sm:$0xff]
    %v30 = vld [vmem:[%s1 + $0x40] sm:$0xff]
    %v31 = vld [vmem:[%s1 + $0x48] sm:$0xff]
    %v32 = vld [vmem:[%s1 + $0x50] sm:$0xff]
    %v33 = vld [vmem:[%s1 + $0x58] sm:$0xff]
    %v34 = vld [vmem:[%s1 + $0x60] sm:$0xff]
    %v35 = vld [vmem:[%s1 + $0x68] sm:$0xff]
    %v36 = vld [vmem:[%s1 + $0x70] sm:$0xff]
    %v37 = vld [vmem:[%s1 + $0x78] sm:$0xff]
    %v38 = vld [vmem:[%s1 + $0x80] sm:$0xff]
    %v39 = vld [vmem:[%s1 + $0x88] sm:$0xff]
    %v40 = vld [vmem:[%s1 + $0x90] sm:$0xff]
    %v41 = vld [vmem:[%s1 + $0x98] sm:$0xff]
    %v42 = vld [vmem:[%s1 + $0xa0] sm:$0xff]
    %v43 = vld [vmem:[%s1 + $0xa8] sm:$0xff]
    %v44 = vld [vmem:[%s1 + $0xb0] sm:$0xff]
    %v45 = vld [vmem:[%s1 + $0xb8] sm:$0xff]
    %v46 = vld [vmem:[%s1 + $0xc0] sm:$0xff]
    %v47 = vld [vmem:[%s1 + $0xc8] sm:$0xff]
    %v48 = vld [vmem:[%s1 + $0xd0] sm:$0xff]
    %v49 = vld [vmem:[%s1 + $0xd8] sm:$0xff]
    %v50 = vld [vmem:[%s1 + $0xe0] sm:$0xff]
    %v51 = vld [vmem:[%s1 + $0xe8] sm:$0xff]
    %v52 = vld [vmem:[%s1 + $0xf0] sm:$0xff]
    %v53 = vld [vmem:[%s1 + $0xf8] sm:$0xff]
    %v54 = vld [vmem:[%s1 + $0x100] sm:$0xff]
    %v55 = vld [vmem:[%s1 + $0x108] sm:$0xff]
    %v56 = vld [vmem:[%s1 + $0x110] sm:$0xff]
    %v57 = vld [vmem:[%s1 + $0x118] sm:$0xff]
    %v58 = vld [vmem:[%s1 + $0x120] sm:$0xff]
    %v59 = vld [vmem:[%s1 + $0x128] sm:$0xff]
    %v60 = vld [vmem:[%s1 + $0x130] sm:$0xff]
    %v61 = vld [vmem:[%s1 + $0x138] sm:$0xff]
    %v62 = vld [vmem:[%s1 + $0x140] sm:$0xff]
    %v63 = vld [vmem:[%s1 + $0x148] sm:$0xff]
    %v64 = vld [vmem:[%s1 + $0x150] sm:$0xff]
    %v65 = vld [vmem:[%s1 + $0x158] sm:$0xff]
    %v66 = vld [vmem:[%s1 + $0x160] sm:$0xff]
    %v67 = vld [vmem:[%s1 + $0x168] sm:$0xff]
    %v68 = vld [vmem:[%s1 + $0x170] sm:$0xff]
    %v69 = vld [vmem:[%s1 + $0x178] sm:$0xff]
    %v70 = vld [vmem:[%s1 + $0x180] sm:$0xff]
    %v71 = vld [vmem:[%s1 + $0x188] sm:$0xff]
    %v72 = vld [vmem:[%s1 + $0x190] sm:$0xff]
    %v73 = vld [vmem:[%s1 + $0x198] sm:$0xff]
    %v74 = vld [vmem:[%s1 + $0x1a0] sm:$0xff]
    %v75 = vld [vmem:[%s1 + $0x1a8] sm:$0xff]
    %v76 = vld [vmem:[%s1 + $0x1b0] sm:$0xff]
    %v77 = vld [vmem:[%s1 + $0x1b8] sm:$0xff]
    %v78 = vld [vmem:[%s1 + $0x1c0] sm:$0xff]
    %v79 = vld [vmem:[%s1 + $0x1c8] sm:$0xff]
    %v80 = vld [vmem:[%s1 + $0x1d0] sm:$0xff]
    %v81 = vld [vmem:[%s1 + $0x1d8] sm:$0xff]
    %v82 = vld [vmem:[%s1 + $0x1e0] sm:$0xff]
    %v83 = vld [vmem:[%s1 + $0x1e8] sm:$0xff]
    %v84 = vld [vmem:[%s1 + $0x1f0] sm:$0xff]
    %v85 = vld [vmem:[%s1 + $0x1f8] sm:$0xff]
    %v86 = vld [vmem:[%s1 + $0x200] sm:$0xff]
    %v87 = vld [vmem:[%s1 + $0x208] sm:$0xff]
    %v88 = vld [vmem:[%s1 + $0x210] sm:$0xff]
    %v89 = vld [vmem:[%s1 + $0x218] sm:$0xff]
    %v90 = vld [vmem:[%s1 + $0x220] sm:$0xff]
    %v91 = vld [vmem:[%s1 + $0x228] sm:$0xff]
    %v92 = vld [vmem:[%s1 + $0x230] sm:$0xff]
    %v93 = vld [vmem:[%s1 + $0x238] sm:$0xff]
    %v94 = vld [vmem:[%s1 + $0x240] sm:$0xff]
    %v95 = vld [vmem:[%s1 + $0x248] sm:$0xff]
    %v96 = vld [vmem:[%s1 + $0x250] sm:$0xff]
    %v97 = vld [vmem:[%s1 + $0x258] sm:$0xff]
    %v98 = vld [vmem:[%s1 + $0x260] sm:$0xff]
    %v99 = vld [vmem:[%s1 + $0x268] sm:$0xff]
    %v100 = vld [vmem:[%s1 + $0x270] sm:$0xff]
    %v101 = vld [vmem:[%s1 + $0x278] sm:$0xff]
    %v102 = vld [vmem:[%s1 + $0x280] sm:$0xff]
    %v103 = vld [vmem:[%s1 + $0x288] sm:$0xff]
    %v104 = vld [vmem:[%s1 + $0x290] sm:$0xff]
    %v105 = vld [vmem:[%s1 + $0x298] sm:$0xff]
    %v106 = vld [vmem:[%s1 + $0x2a0] sm:$0xff]
    %v107 = vld [vmem:[%s1 + $0x2a8] sm:$0xff]
    %v108 = vld [vmem:[%s1 + $0x2b0] sm:$0xff]
    %v109 = vld [vmem:[%s1 + $0x2b8] sm:$0xff]
    %v110 = vld [vmem:[%s1 + $0x2c0] sm:$0xff]
    %v111 = vld [vmem:[%s1 + $0x2c8] sm:$0xff]
    %v112 = vld [vmem:[%s1 + $0x2d0] sm:$0xff]
    %v113 = vld [vmem:[%s1 + $0x2d8] sm:$0xff]
    %v114 = vld [vmem:[%s1 + $0x2e0] sm:$0xff]
    %v115 = vld [vmem:[%s1 + $0x2e8] sm:$0xff]
    %v116 = vld [vmem:[%s1 + $0x2f0] sm:$0xff]
    %v117 = vld [vmem:[%s1 + $0x2f8] sm:$0xff]
    %v118 = vld [vmem:[%s1 + $0x300] sm:$0xff]
    %v119 = vld [vmem:[%s1 + $0x308] sm:$0xff]
    %v120 = vld [vmem:[%s1 + $0x310] sm:$0xff]
    %v121 = vld [vmem:[%s1 + $0x318] sm:$0xff]
    %v122 = vld [vmem:[%s1 + $0x320] sm:$0xff]
    %v123 = vld [vmem:[%s1 + $0x328] sm:$0xff]
    %v124 = vld [vmem:[%s1 + $0x330] sm:$0xff]
    %v125 = vld [vmem:[%s1 + $0x338] sm:$0xff]
    %v126 = vld [vmem:[%s1 + $0x340] sm:$0xff]
    %v127 = vld [vmem:[%s1 + $0x348] sm:$0xff]
    %v128 = vld [vmem:[%s1 + $0x350] sm:$0xff]
    %v129 = vld [vmem:[%s1 + $0x358] sm:$0xff]
    %v130 = vld [vmem:[%s1 + $0x360] sm:$0xff]
    %v131 = vld [vmem:[%s1 + $0x368] sm:$0xff]
    %v132 = vld [vmem:[%s1 + $0x370] sm:$0xff]
    %v133 = vld [vmem:[%s1 + $0x378] sm:$0xff]
    %v134 = vld [vmem:[%s2] sm:$0x1]
    %v136 = vlaneseq
    %v137 = vshrl.u32 %v136, 7
    %v138 = vsub.s32 0, %v137
    %v139 = vrot.slane %v134, %v138
    %141 = vmatprep.subr.mxu0 0.0
    %142 = vmatpush1.msra.mxu0 %v22
    %143 = vmatprep.subr.mxu0 0.0
    %144 = vmatpush1.msra.mxu0 %v23
    %145 = vmatprep.subr.mxu0 0.0
    %146 = vmatpush1.msra.mxu0 %v24
    %147 = vmatprep.subr.mxu0 0.0
    %148 = vmatpush1.msra.mxu0 %v25
    %149 = vmatprep.subr.mxu0 0.0
    %150 = vmatpush1.msra.mxu0 %v26
    %151 = vmatprep.subr.mxu0 0.0
    %152 = vmatpush1.msra.mxu0 %v27
    %153 = vmatprep.subr.mxu0 0.0
    %154 = vmatpush1.msra.mxu0 %v28
    %155 = vmatprep.subr.mxu0 0.0
    %156 = vmatpush1.msra.mxu0 %v29
    %157 = vmatprep.subr.mxu0 0.0
    %158 = vmatpush1.msra.mxu0 %v30
    %159 = vmatprep.subr.mxu0 0.0
    %160 = vmatpush1.msra.mxu0 %v31
    %161 = vmatprep.subr.mxu0 0.0
    %162 = vmatpush1.msra.mxu0 %v32
    %163 = vmatprep.subr.mxu0 0.0
    %164 = vmatpush1.msra.mxu0 %v33
    %165 = vmatprep.subr.mxu0 0.0
    %166 = vmatpush1.msra.mxu0 %v34
    %167 = vmatprep.subr.mxu0 0.0
    %168 = vmatpush1.msra.mxu0 %v35
    %169 = vmatprep.subr.mxu0 0.0
    %170 = vmatpush1.msra.mxu0 %v36
    %171 = vmatprep.subr.mxu0 0.0
    %172 = vmatpush1.msra.mxu0 %v37
    %173 = vmatprep.subr.mxu0 0.0
    %174 = vmatpush1.msra.mxu0 %v38
    %175 = vmatprep.subr.mxu0 0.0
    %176 = vmatpush1.msra.mxu0 %v39
    %177 = vmatprep.subr.mxu0 0.0
    %178 = vmatpush1.msra.mxu0 %v40
    %179 = vmatprep.subr.mxu0 0.0
    %180 = vmatpush1.msra.mxu0 %v41
    %181 = vmatprep.subr.mxu0 0.0
    %182 = vmatpush1.msra.mxu0 %v42
    %183 = vmatprep.subr.mxu0 0.0
    %184 = vmatpush1.msra.mxu0 %v43
    %185 = vmatprep.subr.mxu0 0.0
    %186 = vmatpush1.msra.mxu0 %v44
    %187 = vmatprep.subr.mxu0 0.0
    %188 = vmatpush1.msra.mxu0 %v45
    %189 = vmatprep.subr.mxu0 0.0
    %190 = vmatpush1.msra.mxu0 %v46
    %191 = vmatprep.subr.mxu0 0.0
    %192 = vmatpush1.msra.mxu0 %v47
    %193 = vmatprep.subr.mxu0 0.0
    %194 = vmatpush1.msra.mxu0 %v48
    %195 = vmatprep.subr.mxu0 0.0
    %196 = vmatpush1.msra.mxu0 %v49
    %197 = vmatprep.subr.mxu0 0.0
    %198 = vmatpush1.msra.mxu0 %v50
    %199 = vmatprep.subr.mxu0 0.0
    %200 = vmatpush1.msra.mxu0 %v51
    %201 = vmatprep.subr.mxu0 0.0
    %202 = vmatpush1.msra.mxu0 %v52
    %203 = vmatprep.subr.mxu0 0.0
    %204 = vmatpush1.msra.mxu0 %v53
    %205 = vmatprep.mubr.f32.mxu0 %v16
    %206 = vmatmul.mubr.f32.gmra.mrb[0].mxu0 %v15
    %v207 = vpop.f32.mrb[0].mxu0
    %v208 = vadd.f32 %v139, %v207
    %v209 = vpop.f32.mrb[0].mxu0
    %210 = vdwg.mxu0
    %211 = vmatprep.subr.mxu0 0.0
    %212 = vmatpush1.msra.mxu0 %v54
    %213 = vmatprep.subr.mxu0 0.0
    %214 = vmatpush1.msra.mxu0 %v55
    %215 = vmatprep.subr.mxu0 0.0
    %216 = vmatpush1.msra.mxu0 %v56
    %217 = vmatprep.subr.mxu0 0.0
    %218 = vmatpush1.msra.mxu0 %v57
    %219 = vmatprep.subr.mxu0 0.0
    %220 = vmatpush1.msra.mxu0 %v58
    %221 = vmatprep.subr.mxu0 0.0
    %222 = vmatpush1.msra.mxu0 %v59
    %223 = vmatprep.subr.mxu0 0.0
    %224 = vmatpush1.msra.mxu0 %v60
    %225 = vmatprep.subr.mxu0 0.0
    %226 = vmatpush1.msra.mxu0 %v61
    %227 = vmatprep.subr.mxu0 0.0
    %228 = vmatpush1.msra.mxu0 %v62
    %229 = vmatprep.subr.mxu0 0.0
    %230 = vmatpush1.msra.mxu0 %v63
    %231 = vmatprep.subr.mxu0 0.0
    %232 = vmatpush1.msra.mxu0 %v64
    %233 = vmatprep.subr.mxu0 0.0
    %234 = vmatpush1.msra.mxu0 %v65
    %235 = vmatprep.subr.mxu0 0.0
    %236 = vmatpush1.msra.mxu0 %v66
    %237 = vmatprep.subr.mxu0 0.0
    %238 = vmatpush1.msra.mxu0 %v67
    %239 = vmatprep.subr.mxu0 0.0
    %240 = vmatpush1.msra.mxu0 %v68
    %241 = vmatprep.subr.mxu0 0.0
    %242 = vmatpush1.msra.mxu0 %v69
    %243 = vmatprep.subr.mxu0 0.0
    %244 = vmatpush1.msra.mxu0 %v70
    %245 = vmatprep.subr.mxu0 0.0
    %246 = vmatpush1.msra.mxu0 %v71
    %247 = vmatprep.subr.mxu0 0.0
    %248 = vmatpush1.msra.mxu0 %v72
    %249 = vmatprep.subr.mxu0 0.0
    %250 = vmatpush1.msra.mxu0 %v73
    %251 = vmatprep.subr.mxu0 0.0
    %252 = vmatpush1.msra.mxu0 %v74
    %253 = vmatprep.subr.mxu0 0.0
    %254 = vmatpush1.msra.mxu0 %v75
    %255 = vmatprep.subr.mxu0 0.0
    %256 = vmatpush1.msra.mxu0 %v76
    %257 = vmatprep.subr.mxu0 0.0
    %258 = vmatpush1.msra.mxu0 %v77
    %259 = vmatprep.subr.mxu0 0.0
    %260 = vmatpush1.msra.mxu0 %v78
    %261 = vmatprep.subr.mxu0 0.0
    %262 = vmatpush1.msra.mxu0 %v79
    %263 = vmatprep.subr.mxu0 0.0
    %264 = vmatpush1.msra.mxu0 %v80
    %265 = vmatprep.subr.mxu0 0.0
    %266 = vmatpush1.msra.mxu0 %v81
    %267 = vmatprep.subr.mxu0 0.0
    %268 = vmatpush1.msra.mxu0 %v82
    %269 = vmatprep.subr.mxu0 0.0
    %270 = vmatpush1.msra.mxu0 %v83
    %271 = vmatprep.subr.mxu0 0.0
    %272 = vmatpush1.msra.mxu0 %v84
    %273 = vmatprep.subr.mxu0 0.0
    %274 = vmatpush1.msra.mxu0 %v85
    %275 = vmatprep.mubr.f32.mxu0 %v18
    %276 = vmatmul.mubr.f32.gmra.mrb[0].mxu0 %v17
    %v277 = vpop.f32.mrb[0].mxu0
    %v278 = vadd.f32 %v208, %v277
    %v279 = vpop.f32.mrb[0].mxu0
    %280 = vdwg.mxu0
    %281 = vmatprep.subr.mxu0 0.0
    %282 = vmatpush1.msra.mxu0 %v86
    %283 = vmatprep.subr.mxu0 0.0
    %284 = vmatpush1.msra.mxu0 %v87
    %285 = vmatprep.subr.mxu0 0.0
    %286 = vmatpush1.msra.mxu0 %v88
    %287 = vmatprep.subr.mxu0 0.0
    %288 = vmatpush1.msra.mxu0 %v89
    %289 = vmatprep.subr.mxu0 0.0
    %290 = vmatpush1.msra.mxu0 %v90
    %291 = vmatprep.subr.mxu0 0.0
    %292 = vmatpush1.msra.mxu0 %v91
    %293 = vmatprep.subr.mxu0 0.0
    %294 = vmatpush1.msra.mxu0 %v92
    %295 = vmatprep.subr.mxu0 0.0
    %296 = vmatpush1.msra.mxu0 %v93
    %297 = vmatprep.subr.mxu0 0.0
    %298 = vmatpush1.msra.mxu0 %v94
    %299 = vmatprep.subr.mxu0 0.0
    %300 = vmatpush1.msra.mxu0 %v95
    %301 = vmatprep.subr.mxu0 0.0
    %302 = vmatpush1.msra.mxu0 %v96
    %303 = vmatprep.subr.mxu0 0.0
    %304 = vmatpush1.msra.mxu0 %v97
    %305 = vmatprep.subr.mxu0 0.0
    %306 = vmatpush1.msra.mxu0 %v98
    %307 = vmatprep.subr.mxu0 0.0
    %308 = vmatpush1.msra.mxu0 %v99
    %309 = vmatprep.subr.mxu0 0.0
    %310 = vmatpush1.msra.mxu0 %v100
    %311 = vmatprep.subr.mxu0 0.0
    %312 = vmatpush1.msra.mxu0 %v101
    %313 = vmatprep.subr.mxu0 0.0
    %314 = vmatpush1.msra.mxu0 %v102
    %315 = vmatprep.subr.mxu0 0.0
    %316 = vmatpush1.msra.mxu0 %v103
    %317 = vmatprep.subr.mxu0 0.0
    %318 = vmatpush1.msra.mxu0 %v104
    %319 = vmatprep.subr.mxu0 0.0
    %320 = vmatpush1.msra.mxu0 %v105
    %321 = vmatprep.subr.mxu0 0.0
    %322 = vmatpush1.msra.mxu0 %v106
    %323 = vmatprep.subr.mxu0 0.0
    %324 = vmatpush1.msra.mxu0 %v107
    %325 = vmatprep.subr.mxu0 0.0
    %326 = vmatpush1.msra.mxu0 %v108
    %327 = vmatprep.subr.mxu0 0.0
    %328 = vmatpush1.msra.mxu0 %v109
    %329 = vmatprep.subr.mxu0 0.0
    %330 = vmatpush1.msra.mxu0 %v110
    %331 = vmatprep.subr.mxu0 0.0
    %332 = vmatpush1.msra.mxu0 %v111
    %333 = vmatprep.subr.mxu0 0.0
    %334 = vmatpush1.msra.mxu0 %v112
    %335 = vmatprep.subr.mxu0 0.0
    %336 = vmatpush1.msra.mxu0 %v113
    %337 = vmatprep.subr.mxu0 0.0
    %338 = vmatpush1.msra.mxu0 %v114
    %339 = vmatprep.subr.mxu0 0.0
    %340 = vmatpush1.msra.mxu0 %v115
    %341 = vmatprep.subr.mxu0 0.0
    %342 = vmatpush1.msra.mxu0 %v116
    %343 = vmatprep.subr.mxu0 0.0
    %344 = vmatpush1.msra.mxu0 %v117
    %345 = vmatprep.mubr.f32.mxu0 %v20
    %346 = vmatmul.mubr.f32.gmra.mrb[0].mxu0 %v19
    %v347 = vpop.f32.mrb[0].mxu0
    %v348 = vadd.f32 %v278, %v347
    %v349 = vpop.f32.mrb[0].mxu0
    %350 = vdwg.mxu0
    %351 = vmatprep.subr.mxu0 0.0
    %352 = vmatpush1.msra.mxu0 %v118
    %353 = vmatprep.subr.mxu0 0.0
    %354 = vmatpush1.msra.mxu0 %v119
    %355 = vmatprep.subr.mxu0 0.0
    %356 = vmatpush1.msra.mxu0 %v120
    %357 = vmatprep.subr.mxu0 0.0
    %358 = vmatpush1.msra.mxu0 %v121
    %359 = vmatprep.subr.mxu0 0.0
    %360 = vmatpush1.msra.mxu0 %v122
    %361 = vmatprep.subr.mxu0 0.0
    %362 = vmatpush1.msra.mxu0 %v123
    %363 = vmatprep.subr.mxu0 0.0
    %364 = vmatpush1.msra.mxu0 %v124
    %365 = vmatprep.subr.mxu0 0.0
    %366 = vmatpush1.msra.mxu0 %v125
    %367 = vmatprep.subr.mxu0 0.0
    %368 = vmatpush1.msra.mxu0 %v126
    %369 = vmatprep.subr.mxu0 0.0
    %370 = vmatpush1.msra.mxu0 %v127
    %371 = vmatprep.subr.mxu0 0.0
    %372 = vmatpush1.msra.mxu0 %v128
    %373 = vmatprep.subr.mxu0 0.0
    %374 = vmatpush1.msra.mxu0 %v129
    %375 = vmatprep.subr.mxu0 0.0
    %376 = vmatpush1.msra.mxu0 %v130
    %377 = vmatprep.subr.mxu0 0.0
    %378 = vmatpush1.msra.mxu0 %v131
    %379 = vmatprep.subr.mxu0 0.0
    %380 = vmatpush1.msra.mxu0 %v132
    %381 = vmatprep.subr.mxu0 0.0
    %382 = vmatpush1.msra.mxu0 %v133
    %383 = vmatprep.subr.mxu0 0.0
    %384 = vmatpush1.msra.mxu0 0.0
    %385 = vmatprep.subr.mxu0 0.0
    %386 = vmatpush1.msra.mxu0 0.0
    %387 = vmatprep.subr.mxu0 0.0
    %388 = vmatpush1.msra.mxu0 0.0
    %389 = vmatprep.subr.mxu0 0.0
    %390 = vmatpush1.msra.mxu0 0.0
    %391 = vmatprep.subr.mxu0 0.0
    %392 = vmatpush1.msra.mxu0 0.0
    %393 = vmatprep.subr.mxu0 0.0
    %394 = vmatpush1.msra.mxu0 0.0
    %395 = vmatprep.subr.mxu0 0.0
    %396 = vmatpush1.msra.mxu0 0.0
    %397 = vmatprep.subr.mxu0 0.0
    %398 = vmatpush1.msra.mxu0 0.0
    %399 = vmatprep.subr.mxu0 0.0
    %400 = vmatpush1.msra.mxu0 0.0
    %401 = vmatprep.subr.mxu0 0.0
    %402 = vmatpush1.msra.mxu0 0.0
    %403 = vmatprep.subr.mxu0 0.0
    %404 = vmatpush1.msra.mxu0 0.0
    %405 = vmatprep.subr.mxu0 0.0
    %406 = vmatpush1.msra.mxu0 0.0
    %407 = vmatprep.subr.mxu0 0.0
    %408 = vmatpush1.msra.mxu0 0.0
    %409 = vmatprep.subr.mxu0 0.0
    %410 = vmatpush1.msra.mxu0 0.0
    %411 = vmatprep.subr.mxu0 0.0
    %412 = vmatpush1.msra.mxu0 0.0
    %413 = vmatprep.subr.mxu0 0.0
    %414 = vmatpush1.msra.mxu0 0.0
    %415 = vmatprep.mubr.f32.mxu0 0.0
    %416 = vmatmul.mubr.f32.gmra.mrb[0].mxu0 %v21
    %v417 = vpop.f32.mrb[0].mxu0
    %v418 = vadd.f32 %v348, %v417
    %v419 = vpop.f32.mrb[0].mxu0
    %420 = vdwg.mxu0
    %v421 = vmax.f32 %v418, 0.0
    %vm422 = vcmask 80896
    %v423 = vsel %vm422, %v421, -inf
    %424 = vmax.xlane.f32.xlu0 %v423
    %v425 = vpop.xlane.xlu0 %424
    %v426 = vsub.f32 %v421, %v425
    %v427 = vmul.f32 %v426, 1.442695
    %v428 = vpow.pop %v427
    %v429 = vsel %vm422, %v428, 0.0
    %430 = vadd.xlane.f32.xlu0 %v429
    %v431 = vpop.xlane.xlu0 %430
    %v432 = vlog2.pop %v431
    %v433 = vmul.f32 %v432, 0.6931472
    %v434 = vsub.f32 %v426, %v433
    %435 = vst.msk [vmem:[#allocation2] sm:$0xff] %vm422, %v434
    // Predicated region
    $region14: #{tpu_custom_call.1} parent=1 // pred_check
      _
    $region15: #{tpu_custom_call.1} parent=1 // pred_check_branch
      %437 = sbr.rel (0) target = $region17
    $region16: #{tpu_custom_call.1} parent=1 // pred_region
      %s439 = ssub.s32 128, 128
      %440 = vsyncadd [#allocation3], %s439
      %s442 = sshll.u32 [#allocation2], 4
      %s443 = int_to_ptr.vmem [resolvable:$true] %s442
      %445 = dma.vmem_to_hbm [thread:$0]  %s443, 128, %s3, [#allocation3]
    $region17: #{tpu_custom_call.1} parent=1 // pred_fallthru
      _
    // Predicated region
    $region18: #{tpu_custom_call.1} parent=1 // pred_check
      _
    $region19: #{tpu_custom_call.1} parent=1 // pred_check_branch
      %447 = sbr.rel (0) target = $region21
    $region20: #{tpu_custom_call.1} parent=1 // pred_region
      %448 = dma.done [#allocation3], 128
    $region21: #{tpu_custom_call.1} parent=1 // pred_fallthru
      _
    %449 = vsyncpa [#allocation3], 1

</llo_original>
